<compile_context>
chip_gen: v7x
topology: tpu7x:2x2x1
jax: 0.10.0
libtpu: 0.0.40
codegen_flags: <defaults>
</compile_context>

<pallas_src>
import functools

import jax
import jax.numpy as jnp
from jax.experimental import pallas as pl
from jax.experimental.pallas import tpu as pltpu


def _lm_criterion_kernel(inp_ref, tgt_ref, msk_ref, out_ref, *, n_rows, row_tile):
    i = pl.program_id(0)

    logp = inp_ref[...].astype(jnp.float32)   # (RT, V), cast per-tile in VMEM
    tgt = tgt_ref[...]                        # (RT, 1) i32
    msk = msk_ref[...]                        # (RT, 1) f32

    # Mask off ragged-tail rows (global row index >= n_rows); these rows hold
    # unspecified data since the big slab is not padded in the wrapper.
    row_ids = (
        jax.lax.broadcasted_iota(jnp.int32, (row_tile, 1), 0) + i * row_tile
    )
    valid = row_ids < n_rows                  # (RT, 1) bool

    # gather(input, 2, target): select the target lane, then lane-reduce.
    vocab_ids = jax.lax.broadcasted_iota(jnp.int32, logp.shape, 1)
    sel = jnp.where(vocab_ids == tgt, logp, 0.0)             # (RT, V)
    gathered = jnp.sum(sel, axis=1, keepdims=True)           # (RT, 1)

    # Per-tile partial numerator / denominator (reduced in the wrapper).
    out_ref[0, 0] = jnp.sum(jnp.where(valid, -gathered * msk, 0.0))
    out_ref[0, 1] = jnp.sum(jnp.where(valid, msk, 0.0))


def _round_up(x, m):
    return (x + m - 1) // m * m


def _pick_row_tile(n_rows, vocab, itemsize, budget_bytes=24 * 1024 * 1024):
    """Largest row tile s.t. the double-buffered input tile fits the budget."""
    sub = max(8, 32 // itemsize)              # sublane granularity (8 f32 / 16 bf16)
    rt = budget_bytes // (2 * vocab * itemsize)
    rt = max(sub, min(1024, rt))
    rt = (rt // sub) * sub
    rt = min(rt, _round_up(n_rows, sub))      # never exceed the data itself
    return int(rt)


def language_model_criterion(inp, target, mask, *, row_tile=None):
    """JAX/Pallas equivalent of LanguageModelCriterion.forward."""
    if target.ndim == 3:
        target = target.reshape(-1, target.shape[2])
        mask = mask.reshape(-1, mask.shape[2])

    B, T, V = inp.shape
    target = target[:, :T]
    mask = mask[:, :T].astype(jnp.float32)

    N = B * T
    itemsize = jnp.dtype(inp.dtype).itemsize
    if row_tile is None:
        row_tile = _pick_row_tile(N, V, itemsize)

    num_tiles = (N + row_tile - 1) // row_tile
    N_pad = num_tiles * row_tile

    # Big slab: native dtype, contiguous reshape only (no pad, no astype).
    inp_flat = inp.reshape(N, V)

    # Pad only the tiny per-row arrays so their DMAs are exact.
    tgt_flat = jnp.pad(target.reshape(N).astype(jnp.int32), (0, N_pad - N))
    msk_flat = jnp.pad(mask.reshape(N), (0, N_pad - N))
    tgt_flat = tgt_flat.reshape(N_pad, 1)
    msk_flat = msk_flat.reshape(N_pad, 1)

    kernel = functools.partial(
        _lm_criterion_kernel, n_rows=N, row_tile=row_tile
    )

    cost = pl.CostEstimate(
        flops=3 * N * V,
        transcendentals=0,
        bytes_accessed=int(N * V * itemsize + N_pad * 8 + num_tiles * 8),
    )

    partials = pl.pallas_call(
        kernel,
        out_shape=jax.ShapeDtypeStruct((num_tiles, 2), jnp.float32),
        grid_spec=pltpu.PrefetchScalarGridSpec(
            num_scalar_prefetch=0,
            grid=(num_tiles,),
            in_specs=[
                pl.BlockSpec((row_tile, V), lambda i: (i, 0)),
                pl.BlockSpec((row_tile, 1), lambda i: (i, 0)),
                pl.BlockSpec((row_tile, 1), lambda i: (i, 0)),
            ],
            out_specs=pl.BlockSpec(
                (1, 2), lambda i: (i, 0), memory_space=pltpu.SMEM
            ),
        ),
        compiler_params=pltpu.CompilerParams(
            dimension_semantics=("parallel",),
            vmem_limit_bytes=32 * 1024 * 1024,
        ),
        cost_estimate=cost,
    )(inp_flat, tgt_flat, msk_flat)

    # Tiny cross-tile reduction + final divide in plain JAX.
    return jnp.sum(partials[:, 0]) / jnp.sum(partials[:, 1])


def _reference(inp, target, mask):
    # pure-JAX reference mirroring the PyTorch forward
    if target.ndim == 3:
        target = target.reshape(-1, target.shape[2])
        mask = mask.reshape(-1, mask.shape[2])
    T = inp.shape[1]
    target = target[:, :T]
    mask = mask[:, :T].astype(jnp.float32)
    gathered = jnp.take_along_axis(inp, target[..., None], axis=2)[..., 0]
    out = -gathered * mask
    return jnp.sum(out) / jnp.sum(mask)


if __name__ == "__main__":
    key = jax.random.PRNGKey(0)
    B, T, V = 2, 8, 32
    Tt = T + 2  # target/mask longer than T, gets truncated (as in the module)

    k1, k2, k3 = jax.random.split(key, 3)
    logits = jax.random.normal(k1, (B, T, V), dtype=jnp.float32)
    inp = jax.nn.log_softmax(logits, axis=-1)
    target = jax.random.randint(k2, (B, Tt), 0, V, dtype=jnp.int32)
    mask = (jax.random.uniform(k3, (B, Tt)) > 0.25).astype(jnp.float32)
    # make sure the denominator is nonzero
    mask = mask.at[0, 0].set(1.0)

    loss = language_model_criterion(inp, target, mask)
    loss = jax.block_until_ready(loss)

    ref = _reference(inp, target, mask)
    assert jnp.allclose(loss, ref, atol=1e-5, rtol=1e-5), (loss, ref)

    print("KERNEL_OK")
</pallas_src>

<mosaic_0001>
module attributes {stable_mosaic.version = 11 : i64} {
  func.func @_lm_criterion_kernel(%arg0: i32, %arg1: memref<16x32xf32, #tpu.memory_space<vmem>>, %arg2: memref<16x1xi32, #tpu.memory_space<vmem>>, %arg3: memref<16x1xf32, #tpu.memory_space<vmem>>, %arg4: memref<1x2xf32, #tpu.memory_space<smem>>) attributes {dimension_semantics = [#tpu.dimension_semantics<parallel>], iteration_bounds = array<i64: 1>, scalar_prefetch = 0 : i64, scratch_operands = 0 : i64, tpu.core_type = #tpu.core_type<tc>, window_params = [{transform_indices = @transform_0, window_bounds = array<i64: 16, 32>}, {transform_indices = @transform_1, window_bounds = array<i64: 16, 1>}, {transform_indices = @transform_2, window_bounds = array<i64: 16, 1>}, {transform_indices = @transform_3, window_bounds = array<i64: 1, 2>}]} {
    %c0 = arith.constant 0 : index
    %c0_0 = arith.constant 0 : index
    %0 = vector.load %arg1[%c0, %c0_0] : memref<16x32xf32, #tpu.memory_space<vmem>>, vector<16x32xf32>
    %c0_1 = arith.constant 0 : index
    %c0_2 = arith.constant 0 : index
    %1 = vector.load %arg2[%c0_1, %c0_2] : memref<16x1xi32, #tpu.memory_space<vmem>>, vector<16x1xi32>
    %c0_3 = arith.constant 0 : index
    %c0_4 = arith.constant 0 : index
    %2 = vector.load %arg3[%c0_3, %c0_4] : memref<16x1xf32, #tpu.memory_space<vmem>>, vector<16x1xf32>
    %3 = tpu.iota {dimensions = array<i32: 0>} : vector<16x1xi32>
    %c16_i32 = arith.constant 16 : i32
    %4 = arith.muli %arg0, %c16_i32 : i32
    %5 = vector.broadcast %4 : i32 to vector<16x1xi32>
    %6 = arith.addi %3, %5 : vector<16x1xi32>
    %c16_i32_5 = arith.constant 16 : i32
    %7 = vector.broadcast %c16_i32_5 : i32 to vector<16x1xi32>
    %8 = arith.cmpi slt, %6, %7 : vector<16x1xi32>
    %9 = tpu.iota {dimensions = array<i32: 1>} : vector<16x32xi32>
    %10 = vector.broadcast %1 : vector<16x1xi32> to vector<16x32xi32>
    %11 = arith.cmpi eq, %9, %10 : vector<16x32xi32>
    %cst = arith.constant 0.000000e+00 : f32
    %12 = vector.broadcast %cst : f32 to vector<16x32xf32>
    %13 = arith.select %11, %0, %12 : vector<16x32xi1>, vector<16x32xf32>
    %cst_6 = arith.constant dense<0.000000e+00> : vector<16xf32>
    %14 = vector.multi_reduction <add>, %13, %cst_6 [1] : vector<16x32xf32> to vector<16xf32>
    %15 = vector.shape_cast %14 : vector<16xf32> to vector<16x1xf32>
    %cst_7 = arith.constant 0.000000e+00 : f32
    %16 = vector.broadcast %cst_7 : f32 to vector<16x1xf32>
    %17 = arith.subf %16, %15 : vector<16x1xf32>
    %18 = arith.mulf %17, %2 : vector<16x1xf32>
    %cst_8 = arith.constant 0.000000e+00 : f32
    %19 = vector.broadcast %cst_8 : f32 to vector<16x1xf32>
    %20 = arith.select %8, %18, %19 : vector<16x1xi1>, vector<16x1xf32>
    %21 = vector.shape_cast %20 : vector<16x1xf32> to vector<1x16x1xf32>
    %cst_9 = arith.constant dense<0.000000e+00> : vector<1xf32>
    %22 = vector.multi_reduction <add>, %21, %cst_9 [1, 2] : vector<1x16x1xf32> to vector<1xf32>
    %23 = vector.shape_cast %22 : vector<1xf32> to vector<1x1x1xf32>
    %24 = vector.extract %23[0, 0, 0] : f32 from vector<1x1x1xf32>
    %c0_10 = arith.constant 0 : index
    %c0_11 = arith.constant 0 : index
    %25 = memref.load %arg4[%c0_10, %c0_11] : memref<1x2xf32, #tpu.memory_space<smem>>
    memref.store %24, %arg4[%c0_10, %c0_11] : memref<1x2xf32, #tpu.memory_space<smem>>
    %cst_12 = arith.constant 0.000000e+00 : f32
    %26 = vector.broadcast %cst_12 : f32 to vector<16x1xf32>
    %27 = arith.select %8, %2, %26 : vector<16x1xi1>, vector<16x1xf32>
    %28 = vector.shape_cast %27 : vector<16x1xf32> to vector<1x16x1xf32>
    %cst_13 = arith.constant dense<0.000000e+00> : vector<1xf32>
    %29 = vector.multi_reduction <add>, %28, %cst_13 [1, 2] : vector<1x16x1xf32> to vector<1xf32>
    %30 = vector.shape_cast %29 : vector<1xf32> to vector<1x1x1xf32>
    %31 = vector.extract %30[0, 0, 0] : f32 from vector<1x1x1xf32>
    %c0_14 = arith.constant 0 : index
    %c1 = arith.constant 1 : index
    %32 = memref.load %arg4[%c0_14, %c1] : memref<1x2xf32, #tpu.memory_space<smem>>
    memref.store %31, %arg4[%c0_14, %c1] : memref<1x2xf32, #tpu.memory_space<smem>>
    return
  }
  func.func @transform_0(%arg0: i32) -> (i32, i32) {
    %c0_i32 = arith.constant 0 : i32
    %c0_i32_0 = arith.constant 0 : i32
    return %arg0, %c0_i32 : i32, i32
  }
  func.func @transform_1(%arg0: i32) -> (i32, i32) {
    %c0_i32 = arith.constant 0 : i32
    %c0_i32_0 = arith.constant 0 : i32
    return %arg0, %c0_i32 : i32, i32
  }
  func.func @transform_2(%arg0: i32) -> (i32, i32) {
    %c0_i32 = arith.constant 0 : i32
    %c0_i32_0 = arith.constant 0 : i32
    return %arg0, %c0_i32 : i32, i32
  }
  func.func @transform_3(%arg0: i32) -> (i32, i32) {
    %c0_i32 = arith.constant 0 : i32
    %c0_i32_0 = arith.constant 0 : i32
    return %arg0, %c0_i32 : i32, i32
  }
}

</mosaic_0001>

<llo_original>
// kernel: tpu_custom_call.1
$region0: #{tpu_custom_call.1}
  #allocation0 [shape = 'u32[]', space=smem, size = 0x4, offset = 0x4, fixed_abs, tag = 'smem constant byte address 0x4 - core index']
  #allocation1 [shape = 'u32[144,128]{1,0:T(1,128)}', space=vmem, size = 0x12000, scoped, tag = 'internal scratch']
  %s0 = inlined_call_operand.vmem [shape: f32[16,32], index: 0, kind: input, shape index: {}]
  %s1 = inlined_call_operand.vmem [shape: s32[16,1], index: 1, kind: input, shape index: {}]
  %s2 = inlined_call_operand.vmem [shape: f32[16,1], index: 2, kind: input, shape index: {}]
  %s3 = inlined_call_operand.hbm [shape: f32[1,2], index: 3, kind: output, shape index: {}]
  %s4 = sld [smem:[#allocation0]]
  $region22: #{tpu_custom_call.1} parent=0
    _
  %s6 = ssub.s32 1, %s4
  %s7 = scalar_select 0, %s6, %s4
  $region1: #{tpu_custom_call.1} parent=0
    #allocation2 [shape = 'u8[512]{0}', space=smem, size = 0x200, scoped, tag = 'output window, operand 0, single buffered']
    #allocation3 [shape = 's32[1]{0}', space=sflag, size = 0x4, scoped, tag = 'scoped memory for tpu_custom_call.1']
    %8 = vsyncpa [#allocation3], 0
    // Predicated region
    $region2: #{tpu_custom_call.1} parent=1 // pred_check
      _
    $region3: #{tpu_custom_call.1} parent=1 // pred_check_branch
      %10 = sbr.rel (0) target = $region5
    $region4: #{tpu_custom_call.1} parent=1 // pred_region
      _
    $region5: #{tpu_custom_call.1} parent=1 // pred_fallthru
      _
    // Predicated region
    $region6: #{tpu_custom_call.1} parent=1 // pred_check
      _
    $region7: #{tpu_custom_call.1} parent=1 // pred_check_branch
      %12 = sbr.rel (0) target = $region9
    $region8: #{tpu_custom_call.1} parent=1 // pred_region
      _
    $region9: #{tpu_custom_call.1} parent=1 // pred_fallthru
      _
    // Predicated region
    $region10: #{tpu_custom_call.1} parent=1 // pred_check
      _
    $region11: #{tpu_custom_call.1} parent=1 // pred_check_branch
      %14 = sbr.rel (0) target = $region13
    $region12: #{tpu_custom_call.1} parent=1 // pred_region
      _
    $region13: #{tpu_custom_call.1} parent=1 // pred_fallthru
      _
    %v15 = vld [vmem:[%s0] sm:$0xff]
    %v16 = vld [vmem:[%s0 + $0x8] sm:$0xff]
    %v17 = vld [vmem:[%s1] sm:$0xff]
    %v18 = vld [vmem:[%s1 + $0x8] sm:$0xff]
    %v19 = vld [vmem:[%s2] sm:$0xff]
    %v20 = vld [vmem:[%s2 + $0x8] sm:$0xff]
    %v21 = vlaneseq
    %v22 = vshrl.u32 %v21, 7
    %v23 = vadd.s32 %v22, 8
    %s24 = smul.u32 0, 16
    %v25 = vstv %s24
    %v26 = vadd.s32 %v22, %v25
    %v27 = vadd.s32 %v23, %v25
    %vm28 = vcmp.lt.s32.totalorder %v26, 16
    %vm29 = vcmp.lt.s32.totalorder %v27, 16
    %v30 = vlaneseq
    %v31 = vand.u32 %v30, 127
    %32 = vset.pattern.permute.xlu0 0
    %33 = vperm.xlu0 %32, %v17
    %v34 = vpop.permute.xlu0 %33
    %35 = vset.pattern.permute.xlu0 0
    %36 = vperm.xlu0 %35, %v18
    %v37 = vpop.permute.xlu0 %36
    %vm38 = vcmp.eq.s32.totalorder %v31, %v34
    %vm39 = vcmp.eq.s32.totalorder %v31, %v37
    %v40 = vsel %vm38, %v15, 0.0
    %v41 = vsel %vm39, %v16, 0.0
    %vm42 = vcmask 261120
    %v43 = vsel %vm42, %v40, 0.0
    %44 = vadd.xlane.f32.xlu0 %v43
    %v45 = vpop.xlane.xlu0 %44
    %v46 = vsel %vm42, %v41, 0.0
    %47 = vadd.xlane.f32.xlu0 %v46
    %v48 = vpop.xlane.xlu0 %47
    %v49 = vsub.f32 0.0, %v45
    %v50 = vsub.f32 0.0, %v48
    %v51 = vmul.f32 %v49, %v19
    %v52 = vmul.f32 %v50, %v20
    %v53 = vsel %vm28, %v51, 0.0
    %v54 = vsel %vm29, %v52, 0.0
    %vm55 = vcmask 7168
    %v56 = vsel %vm55, %v53, 0.0
    %v57 = vsel %vm55, %v54, 0.0
    %v58 = vadd.f32 %v56, %v57
    %59 = vadd.xlane.f32.xlu0 %v58
    %v60 = vpop.xlane.xlu0 %59
    %v61 = vrot.slane %v60, 4
    %v62 = vadd.f32 %v60, %v61
    %v63 = vrot.slane %v62, 2
    %v64 = vadd.f32 %v62, %v63
    %v65 = vrot.slane %v64, 1
    %v66 = vadd.f32 %v64, %v65
    %s67 = vtos %v66
    %s68 = scalar_lea.smem [#allocation2], 0
    %69 = sst [smem:[%s68]] %s67
    %v70 = vsel %vm28, %v19, 0.0
    %v71 = vsel %vm29, %v20, 0.0
    %v72 = vsel %vm55, %v70, 0.0
    %v73 = vsel %vm55, %v71, 0.0
    %v74 = vadd.f32 %v72, %v73
    %75 = vadd.xlane.f32.xlu0 %v74
    %v76 = vpop.xlane.xlu0 %75
    %v77 = vrot.slane %v76, 4
    %v78 = vadd.f32 %v76, %v77
    %v79 = vrot.slane %v78, 2
    %v80 = vadd.f32 %v78, %v79
    %v81 = vrot.slane %v80, 1
    %v82 = vadd.f32 %v80, %v81
    %s83 = vtos %v82
    %s84 = scalar_lea.smem [#allocation2], 1
    %85 = sst [smem:[%s84]] %s83
    // Predicated region
    $region14: #{tpu_custom_call.1} parent=1 // pred_check
      _
    $region15: #{tpu_custom_call.1} parent=1 // pred_check_branch
      %87 = sbr.rel (0) target = $region17
    $region16: #{tpu_custom_call.1} parent=1 // pred_region
      %s89 = ssub.s32 16, 16
      %90 = vsyncadd [#allocation3], %s89
      %93 = dma.smem_to_hbm [#allocation2], 16, %s3, [#allocation3]
    $region17: #{tpu_custom_call.1} parent=1 // pred_fallthru
      _
    // Predicated region
    $region18: #{tpu_custom_call.1} parent=1 // pred_check
      _
    $region19: #{tpu_custom_call.1} parent=1 // pred_check_branch
      %95 = sbr.rel (0) target = $region21
    $region20: #{tpu_custom_call.1} parent=1 // pred_region
      %96 = dma.done [#allocation3], 16
    $region21: #{tpu_custom_call.1} parent=1 // pred_fallthru
      _
    %97 = sfence
    %98 = vsyncpa [#allocation3], 1

</llo_original>
